<compile_context>
chip_gen: v6e
topology: v6e:2x2x1
jax: 0.10.0
libtpu: 0.0.40
codegen_flags: <defaults>
</compile_context>

<pallas_src>
import numpy as np
import jax
import jax.numpy as jnp
from jax.experimental import pallas as pl
from jax.experimental.pallas import tpu as pltpu


def _round_up(x, m):
    return ((x + m - 1) // m) * m


# ----------------------------------------------------------------------------
# Fused additive-attention kernel (one query tile per grid step)
# ----------------------------------------------------------------------------
def attn_kernel(q_ref, k_ref, v_ref, mask_ref,
                wq_ref, bq_ref, wk_ref, bk_ref, wv_ref, bv_ref,
                ww_ref, bw_ref, out_ref):
    # ---- fused linear projections (MXU) -------------------------------------
    qp = jnp.dot(q_ref[...], wq_ref[...],
                 preferred_element_type=jnp.float32) + bq_ref[...]     # (TQ, M)
    kp = jnp.dot(k_ref[...], wk_ref[...],
                 preferred_element_type=jnp.float32) + bk_ref[...]     # (NK, M)
    vp = jnp.dot(v_ref[...], wv_ref[...],
                 preferred_element_type=jnp.float32) + bv_ref[...]     # (NK, M)

    # ---- additive attention scores: s[i,j] = ww . tanh(qp[i] + kp[j]) + bw ---
    t = jnp.tanh(qp[:, None, :] + kp[None, :, :])                      # (TQ, NK, M)
    scores = jnp.sum(t * ww_ref[...][None, :, :], axis=-1)             # (TQ, NK)
    scores = scores + bw_ref[0]                                        # SMEM scalar

    # ---- mask + numerically-stable softmax over keys (PyTorch dim=1) --------
    scores = jnp.where(mask_ref[...] != 0, scores, jnp.float32(-1e6))
    m = jnp.max(scores, axis=-1, keepdims=True)
    e = jnp.exp(scores - m)
    w = e / jnp.sum(e, axis=-1, keepdims=True)                         # (TQ, NK)

    # ---- context[i] = sum_j w[i,j] * v[j]  ==  w @ vp  (MXU) -----------------
    out_ref[...] = jnp.dot(w, vp, preferred_element_type=jnp.float32)  # (TQ, M)


# ----------------------------------------------------------------------------
# Wrapper: lane-dense padding, BlockSpecs, single fused pallas_call
# ----------------------------------------------------------------------------
def attn_forward(q, k, v, mask, params):
    """Pallas implementation of Attn.forward.

    q: (Nq, M) f32, k/v: (Nk, M) f32, mask: (Nq, Nk) bool.
    params: dict with PyTorch-layout weights:
      wq/wk/wv: (M, M) Linear.weight, bq/bk/bv: (M,), ww: (1, M), bw: (1,)
    Returns context: (Nq, M) f32.
    """
    nq, m = q.shape
    nk = k.shape[0]
    f32 = jnp.float32

    # Lane/sublane-dense padded sizes (perf): M -> mult of 128, rows -> mult of 8.
    mp = _round_up(m, 128)
    nkp = _round_up(nk, 8)
    nqp = _round_up(nq, 8)
    tq = nqp if nqp <= 256 else 128
    nqp = _round_up(nqp, tq)

    q_p = jnp.pad(q.astype(f32), ((0, nqp - nq), (0, mp - m)))
    k_p = jnp.pad(k.astype(f32), ((0, nkp - nk), (0, mp - m)))
    v_p = jnp.pad(v.astype(f32), ((0, nkp - nk), (0, mp - m)))
    # padded queries / keys are masked out (0); real entries keep the user mask
    mask_p = jnp.pad(mask.astype(jnp.int32), ((0, nqp - nq), (0, nkp - nk)))

    def pad_w(w_):   # PyTorch (out, in) -> transposed (in, out), zero-padded
        return jnp.pad(w_.astype(f32).T, ((0, mp - m), (0, mp - m)))

    def pad_b(b_):
        return jnp.pad(b_.astype(f32), (0, mp - m)).reshape(1, mp)

    wq_t, bq = pad_w(params["wq"]), pad_b(params["bq"])
    wk_t, bk = pad_w(params["wk"]), pad_b(params["bk"])
    wv_t, bv = pad_w(params["wv"]), pad_b(params["bv"])
    ww = jnp.pad(params["ww"].astype(f32).reshape(-1), (0, mp - m)).reshape(1, mp)
    bw = jnp.asarray(params["bw"], f32).reshape((1,))

    grid = (nqp // tq,)
    out = pl.pallas_call(
        attn_kernel,
        out_shape=jax.ShapeDtypeStruct((nqp, mp), f32),
        grid_spec=pltpu.PrefetchScalarGridSpec(
            num_scalar_prefetch=0,
            grid=grid,
            in_specs=[
                pl.BlockSpec((tq, mp), lambda i: (i, 0)),     # q tile
                pl.BlockSpec((nkp, mp), lambda i: (0, 0)),    # k (VMEM-resident)
                pl.BlockSpec((nkp, mp), lambda i: (0, 0)),    # v (VMEM-resident)
                pl.BlockSpec((tq, nkp), lambda i: (i, 0)),    # mask tile
                pl.BlockSpec((mp, mp), lambda i: (0, 0)),     # Wq^T
                pl.BlockSpec((1, mp), lambda i: (0, 0)),      # bq
                pl.BlockSpec((mp, mp), lambda i: (0, 0)),     # Wk^T
                pl.BlockSpec((1, mp), lambda i: (0, 0)),      # bk
                pl.BlockSpec((mp, mp), lambda i: (0, 0)),     # Wv^T
                pl.BlockSpec((1, mp), lambda i: (0, 0)),      # bv
                pl.BlockSpec((1, mp), lambda i: (0, 0)),      # W.weight row
                pl.BlockSpec(memory_space=pltpu.MemorySpace.SMEM),  # W.bias scalar
            ],
            out_specs=pl.BlockSpec((tq, mp), lambda i: (i, 0)),
        ),
        compiler_params=pltpu.CompilerParams(
            dimension_semantics=("parallel",)),
    )(q_p, k_p, v_p, mask_p, wq_t, bq, wk_t, bk, wv_t, bv, ww, bw)

    return out[:nq, :m]


# ----------------------------------------------------------------------------
# Driver
# ----------------------------------------------------------------------------
if __name__ == "__main__":
    MODEL_SIZE = 32
    NQ, NK = 8, 16

    key = jax.random.PRNGKey(0)
    kq, kk, kv, kmask, kp = jax.random.split(key, 5)

    q = jax.random.normal(kq, (NQ, MODEL_SIZE), jnp.float32)
    k = jax.random.normal(kk, (NK, MODEL_SIZE), jnp.float32)
    v = jax.random.normal(kv, (NK, MODEL_SIZE), jnp.float32)
    mask = jax.random.bernoulli(kmask, 0.7, (NQ, NK))
    mask = mask.at[:, 0].set(True)   # avoid degenerate fully-masked rows

    s = 1.0 / np.sqrt(MODEL_SIZE)
    kws = jax.random.split(kp, 8)
    params = {
        "wq": jax.random.uniform(kws[0], (MODEL_SIZE, MODEL_SIZE), jnp.float32, -s, s),
        "bq": jax.random.uniform(kws[1], (MODEL_SIZE,), jnp.float32, -s, s),
        "wk": jax.random.uniform(kws[2], (MODEL_SIZE, MODEL_SIZE), jnp.float32, -s, s),
        "bk": jax.random.uniform(kws[3], (MODEL_SIZE,), jnp.float32, -s, s),
        "wv": jax.random.uniform(kws[4], (MODEL_SIZE, MODEL_SIZE), jnp.float32, -s, s),
        "bv": jax.random.uniform(kws[5], (MODEL_SIZE,), jnp.float32, -s, s),
        "ww": jax.random.uniform(kws[6], (1, MODEL_SIZE), jnp.float32, -s, s),
        "bw": jax.random.uniform(kws[7], (1,), jnp.float32, -s, s),
    }

    out = attn_forward(q, k, v, mask, params)
    out = jax.block_until_ready(out)

    # pure-JAX reference (same math as the PyTorch module)
    def ref(q, k, v, mask, p):
        qp = q @ p["wq"].T + p["bq"]
        kp = k @ p["wk"].T + p["bk"]
        vp = v @ p["wv"].T + p["bv"]
        t = jnp.tanh(qp[:, None, :] + kp[None, :, :])
        scores = jnp.sum(t * p["ww"].reshape(1, 1, -1), axis=-1) + p["bw"][0]
        scores = jnp.where(mask, scores, jnp.float32(-1e6))
        w = jax.nn.softmax(scores, axis=1)
        return (w[:, :, None] * vp[None, :, :]).sum(axis=1)

    expected = np.asarray(ref(q, k, v, mask, params))
    got = np.asarray(out)
    if not np.allclose(got, expected, atol=2e-2, rtol=2e-2):
        max_err = float(np.max(np.abs(got - expected)))
        raise AssertionError(f"Pallas output mismatch vs reference, max abs err = {max_err}")

    print("KERNEL_OK")
</pallas_src>

<mosaic_0001>
module attributes {stable_mosaic.version = 11 : i64} {
  func.func @attn_kernel(%arg0: i32, %arg1: memref<8x128xf32, #tpu.memory_space<vmem>>, %arg2: memref<16x128xf32, #tpu.memory_space<vmem>>, %arg3: memref<16x128xf32, #tpu.memory_space<vmem>>, %arg4: memref<8x16xi32, #tpu.memory_space<vmem>>, %arg5: memref<128x128xf32, #tpu.memory_space<vmem>>, %arg6: memref<1x128xf32, #tpu.memory_space<vmem>>, %arg7: memref<128x128xf32, #tpu.memory_space<vmem>>, %arg8: memref<1x128xf32, #tpu.memory_space<vmem>>, %arg9: memref<128x128xf32, #tpu.memory_space<vmem>>, %arg10: memref<1x128xf32, #tpu.memory_space<vmem>>, %arg11: memref<1x128xf32, #tpu.memory_space<vmem>>, %arg12: memref<1xf32, #tpu.memory_space<smem>>, %arg13: memref<8x128xf32, #tpu.memory_space<vmem>>) attributes {dimension_semantics = [#tpu.dimension_semantics<parallel>], iteration_bounds = array<i64: 1>, scalar_prefetch = 0 : i64, scratch_operands = 0 : i64, tpu.core_type = #tpu.core_type<tc>, window_params = [{transform_indices = @transform_0, window_bounds = array<i64: 8, 128>}, {pipeline_mode = #tpu.pipeline_mode<synchronous>, transform_indices = @transform_1, window_bounds = array<i64: 16, 128>}, {pipeline_mode = #tpu.pipeline_mode<synchronous>, transform_indices = @transform_2, window_bounds = array<i64: 16, 128>}, {transform_indices = @transform_3, window_bounds = array<i64: 8, 16>}, {pipeline_mode = #tpu.pipeline_mode<synchronous>, transform_indices = @transform_4, window_bounds = array<i64: 128, 128>}, {pipeline_mode = #tpu.pipeline_mode<synchronous>, transform_indices = @transform_5, window_bounds = array<i64: 1, 128>}, {pipeline_mode = #tpu.pipeline_mode<synchronous>, transform_indices = @transform_6, window_bounds = array<i64: 128, 128>}, {pipeline_mode = #tpu.pipeline_mode<synchronous>, transform_indices = @transform_7, window_bounds = array<i64: 1, 128>}, {pipeline_mode = #tpu.pipeline_mode<synchronous>, transform_indices = @transform_8, window_bounds = array<i64: 128, 128>}, {pipeline_mode = #tpu.pipeline_mode<synchronous>, transform_indices = @transform_9, window_bounds = array<i64: 1, 128>}, {pipeline_mode = #tpu.pipeline_mode<synchronous>, transform_indices = @transform_10, window_bounds = array<i64: 1, 128>}, {transform_indices = @transform_11, window_bounds = array<i64: 1>}, {transform_indices = @transform_12, window_bounds = array<i64: 8, 128>}]} {
    %c0 = arith.constant 0 : index
    %c0_0 = arith.constant 0 : index
    %0 = vector.load %arg1[%c0, %c0_0] : memref<8x128xf32, #tpu.memory_space<vmem>>, vector<8x128xf32>
    %c0_1 = arith.constant 0 : index
    %c0_2 = arith.constant 0 : index
    %1 = vector.load %arg5[%c0_1, %c0_2] : memref<128x128xf32, #tpu.memory_space<vmem>>, vector<128x128xf32>
    %cst = arith.constant dense<0.000000e+00> : vector<8x128xf32>
    %2 = tpu.matmul %0, %1, %cst {dimension_numbers = #tpu.dot_dimension_numbers<[1], [0], [0], [1], [0, 0, 1, 1], [], []>} : vector<8x128xf32>, vector<128x128xf32>, vector<8x128xf32> -> vector<8x128xf32>
    %c0_3 = arith.constant 0 : index
    %c0_4 = arith.constant 0 : index
    %3 = vector.load %arg6[%c0_3, %c0_4] : memref<1x128xf32, #tpu.memory_space<vmem>>, vector<1x128xf32>
    %4 = vector.broadcast %3 : vector<1x128xf32> to vector<8x128xf32>
    %5 = arith.addf %2, %4 : vector<8x128xf32>
    %c0_5 = arith.constant 0 : index
    %c0_6 = arith.constant 0 : index
    %6 = vector.load %arg2[%c0_5, %c0_6] : memref<16x128xf32, #tpu.memory_space<vmem>>, vector<16x128xf32>
    %c0_7 = arith.constant 0 : index
    %c0_8 = arith.constant 0 : index
    %7 = vector.load %arg7[%c0_7, %c0_8] : memref<128x128xf32, #tpu.memory_space<vmem>>, vector<128x128xf32>
    %cst_9 = arith.constant dense<0.000000e+00> : vector<16x128xf32>
    %8 = tpu.matmul %6, %7, %cst_9 {dimension_numbers = #tpu.dot_dimension_numbers<[1], [0], [0], [1], [0, 0, 1, 1], [], []>} : vector<16x128xf32>, vector<128x128xf32>, vector<16x128xf32> -> vector<16x128xf32>
    %c0_10 = arith.constant 0 : index
    %c0_11 = arith.constant 0 : index
    %9 = vector.load %arg8[%c0_10, %c0_11] : memref<1x128xf32, #tpu.memory_space<vmem>>, vector<1x128xf32>
    %10 = vector.broadcast %9 : vector<1x128xf32> to vector<16x128xf32>
    %11 = arith.addf %8, %10 : vector<16x128xf32>
    %c0_12 = arith.constant 0 : index
    %c0_13 = arith.constant 0 : index
    %12 = vector.load %arg3[%c0_12, %c0_13] : memref<16x128xf32, #tpu.memory_space<vmem>>, vector<16x128xf32>
    %c0_14 = arith.constant 0 : index
    %c0_15 = arith.constant 0 : index
    %13 = vector.load %arg9[%c0_14, %c0_15] : memref<128x128xf32, #tpu.memory_space<vmem>>, vector<128x128xf32>
    %cst_16 = arith.constant dense<0.000000e+00> : vector<16x128xf32>
    %14 = tpu.matmul %12, %13, %cst_16 {dimension_numbers = #tpu.dot_dimension_numbers<[1], [0], [0], [1], [0, 0, 1, 1], [], []>} : vector<16x128xf32>, vector<128x128xf32>, vector<16x128xf32> -> vector<16x128xf32>
    %c0_17 = arith.constant 0 : index
    %c0_18 = arith.constant 0 : index
    %15 = vector.load %arg10[%c0_17, %c0_18] : memref<1x128xf32, #tpu.memory_space<vmem>>, vector<1x128xf32>
    %16 = vector.broadcast %15 : vector<1x128xf32> to vector<16x128xf32>
    %17 = arith.addf %14, %16 : vector<16x128xf32>
    %18 = vector.shape_cast %5 : vector<8x128xf32> to vector<8x1x128xf32>
    %19 = vector.shape_cast %11 : vector<16x128xf32> to vector<1x16x128xf32>
    %20 = vector.broadcast %18 : vector<8x1x128xf32> to vector<8x16x128xf32>
    %21 = vector.broadcast %19 : vector<1x16x128xf32> to vector<8x16x128xf32>
    %22 = arith.addf %20, %21 : vector<8x16x128xf32>
    %23 = math.tanh %22 : vector<8x16x128xf32>
    %c0_19 = arith.constant 0 : index
    %c0_20 = arith.constant 0 : index
    %24 = vector.load %arg11[%c0_19, %c0_20] : memref<1x128xf32, #tpu.memory_space<vmem>>, vector<1x128xf32>
    %25 = vector.shape_cast %24 : vector<1x128xf32> to vector<1x1x128xf32>
    %26 = vector.broadcast %25 : vector<1x1x128xf32> to vector<8x16x128xf32>
    %27 = arith.mulf %23, %26 : vector<8x16x128xf32>
    %cst_21 = arith.constant dense<0.000000e+00> : vector<8x16xf32>
    %28 = vector.multi_reduction <add>, %27, %cst_21 [2] : vector<8x16x128xf32> to vector<8x16xf32>
    %c0_22 = arith.constant 0 : index
    %29 = memref.load %arg12[%c0_22] : memref<1xf32, #tpu.memory_space<smem>>
    %30 = vector.broadcast %29 : f32 to vector<8x16xf32>
    %31 = arith.addf %28, %30 : vector<8x16xf32>
    %c0_23 = arith.constant 0 : index
    %c0_24 = arith.constant 0 : index
    %32 = vector.load %arg4[%c0_23, %c0_24] : memref<8x16xi32, #tpu.memory_space<vmem>>, vector<8x16xi32>
    %c0_i32 = arith.constant 0 : i32
    %33 = vector.broadcast %c0_i32 : i32 to vector<8x16xi32>
    %34 = arith.cmpi ne, %32, %33 : vector<8x16xi32>
    %cst_25 = arith.constant -1.000000e+06 : f32
    %35 = vector.broadcast %cst_25 : f32 to vector<8x16xf32>
    %36 = arith.select %34, %31, %35 : vector<8x16xi1>, vector<8x16xf32>
    %cst_26 = arith.constant dense<0xFF800000> : vector<8xf32>
    %37 = vector.multi_reduction <maximumf>, %36, %cst_26 [1] : vector<8x16xf32> to vector<8xf32>
    %38 = vector.shape_cast %37 : vector<8xf32> to vector<8x1xf32>
    %39 = vector.broadcast %38 : vector<8x1xf32> to vector<8x16xf32>
    %40 = arith.subf %36, %39 : vector<8x16xf32>
    %41 = math.exp %40 : vector<8x16xf32>
    %cst_27 = arith.constant dense<0.000000e+00> : vector<8xf32>
    %42 = vector.multi_reduction <add>, %41, %cst_27 [1] : vector<8x16xf32> to vector<8xf32>
    %43 = vector.shape_cast %42 : vector<8xf32> to vector<8x1xf32>
    %44 = vector.broadcast %43 : vector<8x1xf32> to vector<8x16xf32>
    %45 = arith.divf %41, %44 : vector<8x16xf32>
    %cst_28 = arith.constant dense<0.000000e+00> : vector<8x128xf32>
    %46 = tpu.matmul %45, %17, %cst_28 {dimension_numbers = #tpu.dot_dimension_numbers<[1], [0], [0], [1], [0, 0, 1, 1], [], []>} : vector<8x16xf32>, vector<16x128xf32>, vector<8x128xf32> -> vector<8x128xf32>
    %c0_29 = arith.constant 0 : index
    %c0_30 = arith.constant 0 : index
    %47 = vector.load %arg13[%c0_29, %c0_30] : memref<8x128xf32, #tpu.memory_space<vmem>>, vector<8x128xf32>
    tpu.vector_store %arg13[%c0_29, %c0_30], %46 {strides = array<i32>} : memref<8x128xf32, #tpu.memory_space<vmem>>, vector<8x128xf32>,
    return
  }
  func.func @transform_0(%arg0: i32) -> (i32, i32) {
    %c0_i32 = arith.constant 0 : i32
    %c0_i32_0 = arith.constant 0 : i32
    return %arg0, %c0_i32 : i32, i32
  }
  func.func @transform_1(%arg0: i32) -> (i32, i32) {
    %c0_i32 = arith.constant 0 : i32
    %c0_i32_0 = arith.constant 0 : i32
    %c0_i32_1 = arith.constant 0 : i32
    return %c0_i32, %c0_i32_0 : i32, i32
  }
  func.func @transform_2(%arg0: i32) -> (i32, i32) {
    %c0_i32 = arith.constant 0 : i32
    %c0_i32_0 = arith.constant 0 : i32
    %c0_i32_1 = arith.constant 0 : i32
    return %c0_i32, %c0_i32_0 : i32, i32
  }
  func.func @transform_3(%arg0: i32) -> (i32, i32) {
    %c0_i32 = arith.constant 0 : i32
    %c0_i32_0 = arith.constant 0 : i32
    return %arg0, %c0_i32 : i32, i32
  }
  func.func @transform_4(%arg0: i32) -> (i32, i32) {
    %c0_i32 = arith.constant 0 : i32
    %c0_i32_0 = arith.constant 0 : i32
    %c0_i32_1 = arith.constant 0 : i32
    return %c0_i32, %c0_i32_0 : i32, i32
  }
  func.func @transform_5(%arg0: i32) -> (i32, i32) {
    %c0_i32 = arith.constant 0 : i32
    %c0_i32_0 = arith.constant 0 : i32
    %c0_i32_1 = arith.constant 0 : i32
    return %c0_i32, %c0_i32_0 : i32, i32
  }
  func.func @transform_6(%arg0: i32) -> (i32, i32) {
    %c0_i32 = arith.constant 0 : i32
    %c0_i32_0 = arith.constant 0 : i32
    %c0_i32_1 = arith.constant 0 : i32
    return %c0_i32, %c0_i32_0 : i32, i32
  }
  func.func @transform_7(%arg0: i32) -> (i32, i32) {
    %c0_i32 = arith.constant 0 : i32
    %c0_i32_0 = arith.constant 0 : i32
    %c0_i32_1 = arith.constant 0 : i32
    return %c0_i32, %c0_i32_0 : i32, i32
  }
  func.func @transform_8(%arg0: i32) -> (i32, i32) {
    %c0_i32 = arith.constant 0 : i32
    %c0_i32_0 = arith.constant 0 : i32
    %c0_i32_1 = arith.constant 0 : i32
    return %c0_i32, %c0_i32_0 : i32, i32
  }
  func.func @transform_9(%arg0: i32) -> (i32, i32) {
    %c0_i32 = arith.constant 0 : i32
    %c0_i32_0 = arith.constant 0 : i32
    %c0_i32_1 = arith.constant 0 : i32
    return %c0_i32, %c0_i32_0 : i32, i32
  }
  func.func @transform_10(%arg0: i32) -> (i32, i32) {
    %c0_i32 = arith.constant 0 : i32
    %c0_i32_0 = arith.constant 0 : i32
    %c0_i32_1 = arith.constant 0 : i32
    return %c0_i32, %c0_i32_0 : i32, i32
  }
  func.func @transform_11(%arg0: i32) -> i32 {
    %c0_i32 = arith.constant 0 : i32
    %c0_i32_0 = arith.constant 0 : i32
    return %c0_i32 : i32
  }
  func.func @transform_12(%arg0: i32) -> (i32, i32) {
    %c0_i32 = arith.constant 0 : i32
    %c0_i32_0 = arith.constant 0 : i32
    return %arg0, %c0_i32 : i32, i32
  }
}

</mosaic_0001>

<llo_original>
// kernel: tpu_custom_call.1
$region0: #{tpu_custom_call.1}
  #allocation0 [shape = 'u32[]', space=smem, size = 0x4, offset = 0x4, fixed_abs, tag = 'smem constant byte address 0x4 - core index']
  #allocation1 [shape = 'u32[144,128]{1,0:T(1,128)}', space=vmem, size = 0x12000, scoped, tag = 'internal scratch']
  #allocation2 [shape = 'f32[1]{0:T(128)S(6)}', space=smem, size = 0x200, scoped, tag = 'scoped memory for tpu_custom_call.1']
  %s0 = inlined_call_operand.hbm [shape: f32[8,128], index: 0, kind: input, shape index: {}]
  %s1 = inlined_call_operand.hbm [shape: f32[16,128], index: 1, kind: input, shape index: {}]
  %s2 = inlined_call_operand.hbm [shape: f32[16,128], index: 2, kind: input, shape index: {}]
  %s3 = inlined_call_operand.hbm [shape: s32[8,16], index: 3, kind: input, shape index: {}]
  %s4 = inlined_call_operand.hbm [shape: f32[128,128], index: 4, kind: input, shape index: {}]
  %s5 = inlined_call_operand.vmem [shape: f32[1,128], index: 5, kind: input, shape index: {}]
  %s6 = inlined_call_operand.hbm [shape: f32[128,128], index: 6, kind: input, shape index: {}]
  %s7 = inlined_call_operand.vmem [shape: f32[1,128], index: 7, kind: input, shape index: {}]
  %s8 = inlined_call_operand.hbm [shape: f32[128,128], index: 8, kind: input, shape index: {}]
  %s9 = inlined_call_operand.vmem [shape: f32[1,128], index: 9, kind: input, shape index: {}]
  %s10 = inlined_call_operand.vmem [shape: f32[1,128], index: 10, kind: input, shape index: {}]
  %s11 = inlined_call_operand.<no memory space> [shape: f32[1], index: 11, kind: input, shape index: {}]
  %s12 = inlined_call_operand.hbm [shape: f32[8,128], index: 12, kind: output, shape index: {}]
  %s13 = sld [smem:[#allocation0]]
  $region86: #{tpu_custom_call.1} parent=0
    _
  %s15 = ssub.s32 1, %s13
  %s16 = scalar_select 0, %s15, %s13
  %17 = sst [smem:[#allocation2]] %s11
  $region1: #{tpu_custom_call.1} parent=0
    #allocation3 [shape = 'u8[4096]{0}', space=vmem, size = 0x1000, scoped, tag = 'input window, operand 0, single buffered']
    #allocation4 [shape = 's32[1]{0}', space=sflag, size = 0x4, scoped, tag = 'scoped memory for tpu_custom_call.1']
    #allocation5 [shape = 's32[1]{0}', space=sflag, size = 0x4, scoped, tag = 'scoped memory for tpu_custom_call.1']
    #allocation6 [shape = 'u8[8192]{0}', space=vmem, size = 0x2000, scoped, tag = 'input window, operand 1, single buffered']
    #allocation7 [shape = 's32[1]{0}', space=sflag, size = 0x4, scoped, tag = 'scoped memory for tpu_custom_call.1']
    #allocation8 [shape = 'u8[8192]{0}', space=vmem, size = 0x2000, scoped, tag = 'input window, operand 2, single buffered']
    #allocation9 [shape = 'u8[4096]{0}', space=vmem, size = 0x1000, scoped, tag = 'input window, operand 3, single buffered']
    #allocation10 [shape = 's32[1]{0}', space=sflag, size = 0x4, scoped, tag = 'scoped memory for tpu_custom_call.1']
    #allocation11 [shape = 'u8[65536]{0}', space=vmem, size = 0x10000, scoped, tag = 'input window, operand 4, single buffered']
    #allocation12 [shape = 'u8[65536]{0}', space=vmem, size = 0x10000, scoped, tag = 'input window, operand 6, single buffered']
    #allocation13 [shape = 's32[1]{0}', space=sflag, size = 0x4, scoped, tag = 'scoped memory for tpu_custom_call.1']
    #allocation14 [shape = 'u8[65536]{0}', space=vmem, size = 0x10000, scoped, tag = 'input window, operand 8, single buffered']
    #allocation15 [shape = 'u8[4096]{0}', space=vmem, size = 0x1000, scoped, tag = 'output window, operand 0, single buffered']
    %18 = vsyncpa [#allocation4], 0
    %19 = vsyncpa [#allocation7], 0
    %20 = vsyncpa [#allocation10], 0
    %21 = vsyncpa [#allocation13], 0
    %22 = vsyncpa [#allocation5], 0
    // Predicated region
    $region2: #{tpu_custom_call.1} parent=1 // pred_check
      _
    $region3: #{tpu_custom_call.1} parent=1 // pred_check_branch
      %24 = sbr.rel (0) target = $region5
    $region4: #{tpu_custom_call.1} parent=1 // pred_region
      %s26 = ssub.s32 128, 128
      %27 = vsyncadd [#allocation4], %s26
      %s29 = sshll.u32 [#allocation3], 4
      %s30 = int_to_ptr.vmem [resolvable:$true] %s29
      %32 = dma.hbm_to_vmem [thread:$0]  %s0, 128, %s30, [#allocation4]
    $region5: #{tpu_custom_call.1} parent=1 // pred_fallthru
      _
    // Predicated region
    $region6: #{tpu_custom_call.1} parent=1 // pred_check
      _
    $region7: #{tpu_custom_call.1} parent=1 // pred_check_branch
      %34 = sbr.rel (0) target = $region9
    $region8: #{tpu_custom_call.1} parent=1 // pred_region
      %s36 = ssub.s32 256, 256
      %37 = vsyncadd [#allocation7], %s36
      %s38 = sshll.u32 [#allocation6], 4
      %s39 = int_to_ptr.vmem [resolvable:$true] %s38
      %44 = dma.hbm_to_vmem [thread:$0]  %s1, 256, %s39, [#allocation7], 128, 128, 8
    $region9: #{tpu_custom_call.1} parent=1 // pred_fallthru
      _
    // Predicated region
    $region10: #{tpu_custom_call.1} parent=1 // pred_check
      _
    $region11: #{tpu_custom_call.1} parent=1 // pred_check_branch
      %46 = sbr.rel (0) target = $region13
    $region12: #{tpu_custom_call.1} parent=1 // pred_region
      %s48 = ssub.s32 256, 256
      %49 = vsyncadd [#allocation7], %s48
      %s50 = sshll.u32 [#allocation8], 4
      %s51 = int_to_ptr.vmem [resolvable:$true] %s50
      %56 = dma.hbm_to_vmem [thread:$0]  %s2, 256, %s51, [#allocation7], 128, 128, 8
    $region13: #{tpu_custom_call.1} parent=1 // pred_fallthru
      _
    // Predicated region
    $region14: #{tpu_custom_call.1} parent=1 // pred_check
      _
    $region15: #{tpu_custom_call.1} parent=1 // pred_check_branch
      %58 = sbr.rel (0) target = $region17
    $region16: #{tpu_custom_call.1} parent=1 // pred_region
      %s60 = ssub.s32 128, 128
      %61 = vsyncadd [#allocation10], %s60
      %s63 = sshll.u32 [#allocation9], 4
      %s64 = int_to_ptr.vmem [resolvable:$true] %s63
      %66 = dma.hbm_to_vmem [thread:$0]  %s3, 128, %s64, [#allocation10]
    $region17: #{tpu_custom_call.1} parent=1 // pred_fallthru
      _
    // Predicated region
    $region18: #{tpu_custom_call.1} parent=1 // pred_check
      _
    $region19: #{tpu_custom_call.1} parent=1 // pred_check_branch
      %68 = sbr.rel (0) target = $region21
    $region20: #{tpu_custom_call.1} parent=1 // pred_region
      %s70 = ssub.s32 2048, 2048
      %71 = vsyncadd [#allocation10], %s70
      %s72 = sshll.u32 [#allocation11], 4
      %s73 = int_to_ptr.vmem [resolvable:$true] %s72
      %78 = dma.hbm_to_vmem [thread:$0]  %s4, 2048, %s73, [#allocation10], 128, 128, 8
    $region21: #{tpu_custom_call.1} parent=1 // pred_fallthru
      _
    // Predicated region
    $region22: #{tpu_custom_call.1} parent=1 // pred_check
      _
    $region23: #{tpu_custom_call.1} parent=1 // pred_check_branch
      %80 = sbr.rel (0) target = $region25
    $region24: #{tpu_custom_call.1} parent=1 // pred_region
      _
    $region25: #{tpu_custom_call.1} parent=1 // pred_fallthru
      _
    // Predicated region
    $region26: #{tpu_custom_call.1} parent=1 // pred_check
      _
    $region27: #{tpu_custom_call.1} parent=1 // pred_check_branch
      %82 = sbr.rel (0) target = $region29
    $region28: #{tpu_custom_call.1} parent=1 // pred_region
      %s84 = ssub.s32 2048, 2048
      %85 = vsyncadd [#allocation13], %s84
      %s86 = sshll.u32 [#allocation12], 4
      %s87 = int_to_ptr.vmem [resolvable:$true] %s86
      %92 = dma.hbm_to_vmem [thread:$0]  %s6, 2048, %s87, [#allocation13], 128, 128, 8
    $region29: #{tpu_custom_call.1} parent=1 // pred_fallthru
      _
    // Predicated region
    $region30: #{tpu_custom_call.1} parent=1 // pred_check
      _
    $region31: #{tpu_custom_call.1} parent=1 // pred_check_branch
      %94 = sbr.rel (0) target = $region33
    $region32: #{tpu_custom_call.1} parent=1 // pred_region
      _
    $region33: #{tpu_custom_call.1} parent=1 // pred_fallthru
      _
    // Predicated region
    $region34: #{tpu_custom_call.1} parent=1 // pred_check
      _
    $region35: #{tpu_custom_call.1} parent=1 // pred_check_branch
      %96 = sbr.rel (0) target = $region37
    $region36: #{tpu_custom_call.1} parent=1 // pred_region
      %s98 = ssub.s32 2048, 2048
      %99 = vsyncadd [#allocation13], %s98
      %s100 = sshll.u32 [#allocation14], 4
      %s101 = int_to_ptr.vmem [resolvable:$true] %s100
      %106 = dma.hbm_to_vmem [thread:$0]  %s8, 2048, %s101, [#allocation13], 128, 128, 8
    $region37: #{tpu_custom_call.1} parent=1 // pred_fallthru
      _
    // Predicated region
    $region38: #{tpu_custom_call.1} parent=1 // pred_check
      _
    $region39: #{tpu_custom_call.1} parent=1 // pred_check_branch
      %108 = sbr.rel (0) target = $region41
    $region40: #{tpu_custom_call.1} parent=1 // pred_region
      _
    $region41: #{tpu_custom_call.1} parent=1 // pred_fallthru
      _
    // Predicated region
    $region42: #{tpu_custom_call.1} parent=1 // pred_check
      _
    $region43: #{tpu_custom_call.1} parent=1 // pred_check_branch
      %110 = sbr.rel (0) target = $region45
    $region44: #{tpu_custom_call.1} parent=1 // pred_region
      _
    $region45: #{tpu_custom_call.1} parent=1 // pred_fallthru
      _
    // Predicated region
    $region46: #{tpu_custom_call.1} parent=1 // pred_check
      _
    $region47: #{tpu_custom_call.1} parent=1 // pred_check_branch
      %112 = sbr.rel (0) target = $region49
    $region48: #{tpu_custom_call.1} parent=1 // pred_region
      _
    $region49: #{tpu_custom_call.1} parent=1 // pred_fallthru
      _
    // Predicated region
    $region50: #{tpu_custom_call.1} parent=1 // pred_check
      _
    $region51: #{tpu_custom_call.1} parent=1 // pred_check_branch
      %114 = sbr.rel (0) target = $region53
    $region52: #{tpu_custom_call.1} parent=1 // pred_region
      %115 = dma.done [#allocation4], 128
    $region53: #{tpu_custom_call.1} parent=1 // pred_fallthru
      _
    // Predicated region
    $region54: #{tpu_custom_call.1} parent=1 // pred_check
      _
    $region55: #{tpu_custom_call.1} parent=1 // pred_check_branch
      %117 = sbr.rel (0) target = $region57
    $region56: #{tpu_custom_call.1} parent=1 // pred_region
      %118 = dma.done [#allocation7], 256
    $region57: #{tpu_custom_call.1} parent=1 // pred_fallthru
      _
    // Predicated region
    $region58: #{tpu_custom_call.1} parent=1 // pred_check
      _
    $region59: #{tpu_custom_call.1} parent=1 // pred_check_branch
      %120 = sbr.rel (0) target = $region61
    $region60: #{tpu_custom_call.1} parent=1 // pred_region
      %121 = dma.done [#allocation7], 256
    $region61: #{tpu_custom_call.1} parent=1 // pred_fallthru
      _
    // Predicated region
    $region62: #{tpu_custom_call.1} parent=1 // pred_check
      _
    $region63: #{tpu_custom_call.1} parent=1 // pred_check_branch
      %123 = sbr.rel (0) target = $region65
    $region64: #{tpu_custom_call.1} parent=1 // pred_region
      %124 = dma.done [#allocation10], 128
    $region65: #{tpu_custom_call.1} parent=1 // pred_fallthru
      _
    // Predicated region
    $region66: #{tpu_custom_call.1} parent=1 // pred_check
      _
    $region67: #{tpu_custom_call.1} parent=1 // pred_check_branch
      %126 = sbr.rel (0) target = $region69
    $region68: #{tpu_custom_call.1} parent=1 // pred_region
      %127 = dma.done [#allocation10], 2048
    $region69: #{tpu_custom_call.1} parent=1 // pred_fallthru
      _
    // Predicated region
    $region70: #{tpu_custom_call.1} parent=1 // pred_check
      _
    $region71: #{tpu_custom_call.1} parent=1 // pred_check_branch
      %129 = sbr.rel (0) target = $region73
    $region72: #{tpu_custom_call.1} parent=1 // pred_region
      %130 = dma.done [#allocation13], 2048
    $region73: #{tpu_custom_call.1} parent=1 // pred_fallthru
      _
    // Predicated region
    $region74: #{tpu_custom_call.1} parent=1 // pred_check
      _
    $region75: #{tpu_custom_call.1} parent=1 // pred_check_branch
      %132 = sbr.rel (0) target = $region77
    $region76: #{tpu_custom_call.1} parent=1 // pred_region
      %133 = dma.done [#allocation13], 2048
    $region77: #{tpu_custom_call.1} parent=1 // pred_fallthru
      _
    %v134 = vld [vmem:[#allocation3] sm:$0xff]
    %v135 = vld [vmem:[#allocation11] sm:$0xff]
    %v136 = vld [vmem:[#allocation11 + $0x8] sm:$0xff]
    %v137 = vld [vmem:[#allocation11 + $0x10] sm:$0xff]
    %v138 = vld [vmem:[#allocation11 + $0x18] sm:$0xff]
    %v139 = vld [vmem:[#allocation11 + $0x20] sm:$0xff]
    %v140 = vld [vmem:[#allocation11 + $0x28] sm:$0xff]
    %v141 = vld [vmem:[#allocation11 + $0x30] sm:$0xff]
    %v142 = vld [vmem:[#allocation11 + $0x38] sm:$0xff]
    %v143 = vld [vmem:[#allocation11 + $0x40] sm:$0xff]
    %v144 = vld [vmem:[#allocation11 + $0x48] sm:$0xff]
    %v145 = vld [vmem:[#allocation11 + $0x50] sm:$0xff]
    %v146 = vld [vmem:[#allocation11 + $0x58] sm:$0xff]
    %v147 = vld [vmem:[#allocation11 + $0x60] sm:$0xff]
    %v148 = vld [vmem:[#allocation11 + $0x68] sm:$0xff]
    %v149 = vld [vmem:[#allocation11 + $0x70] sm:$0xff]
    %v150 = vld [vmem:[#allocation11 + $0x78] sm:$0xff]
    %v151 = vld [vmem:[%s5] sm:$0x1]
    %v153 = vlaneseq
    %v154 = vshrl.u32 %v153, 7
    %v155 = vsub.s32 0, %v154
    %v156 = vrot.slane %v151, %v155
    %158 = vmatprep.subr.mxu0 0.0
    %159 = vmatpush1.msra.mxu0 %v150
    %160 = vmatprep.subr.mxu0 0.0
    %161 = vmatpush1.msra.mxu0 %v149
    %162 = vmatprep.subr.mxu0 0.0
    %163 = vmatpush1.msra.mxu0 %v148
    %164 = vmatprep.subr.mxu0 0.0
    %165 = vmatpush1.msra.mxu0 %v147
    %166 = vmatprep.subr.mxu0 0.0
    %167 = vmatpush1.msra.mxu0 %v146
    %168 = vmatprep.subr.mxu0 0.0
    %169 = vmatpush1.msra.mxu0 %v145
    %170 = vmatprep.subr.mxu0 0.0
    %171 = vmatpush1.msra.mxu0 %v144
    %172 = vmatprep.subr.mxu0 0.0
    %173 = vmatpush1.msra.mxu0 %v143
    %174 = vmatprep.subr.mxu0 0.0
    %175 = vmatpush1.msra.mxu0 %v142
    %176 = vmatprep.subr.mxu0 0.0
    %177 = vmatpush1.msra.mxu0 %v141
    %178 = vmatprep.subr.mxu0 0.0
    %179 = vmatpush1.msra.mxu0 %v140
    %180 = vmatprep.subr.mxu0 0.0
    %181 = vmatpush1.msra.mxu0 %v139
    %182 = vmatprep.subr.mxu0 0.0
    %183 = vmatpush1.msra.mxu0 %v138
    %184 = vmatprep.subr.mxu0 0.0
    %185 = vmatpush1.msra.mxu0 %v137
    %186 = vmatprep.subr.mxu0 0.0
    %187 = vmatpush1.msra.mxu0 %v136
    %188 = vmatprep.subr.mxu0 0.0
    %189 = vmatpush1.msra.mxu0 %v135
    %190 = vmatprep.subr.mxu0 0.0
    %191 = vmatpush2.msra.mxu0 0.0
    %192 = vmatprep.subr.mxu0 0.0
    %193 = vmatpush2.msra.mxu0 0.0
    %194 = vmatprep.subr.mxu0 0.0
    %195 = vmatpush2.msra.mxu0 0.0
    %196 = vmatprep.subr.mxu0 0.0
    %197 = vmatpush2.msra.mxu0 0.0
    %198 = vmatprep.subr.mxu0 0.0
    %199 = vmatpush2.msra.mxu0 0.0
    %200 = vmatprep.subr.mxu0 0.0
    %201 = vmatpush2.msra.mxu0 0.0
    %202 = vmatprep.subr.mxu0 0.0
    %203 = vmatpush2.msra.mxu0 0.0
    %204 = vmatprep.subr.mxu0 0.0
    %205 = vmatpush2.msra.mxu0 0.0
    %206 = vmatprep.subr.mxu0 0.0
    %207 = vmatpush2.msra.mxu0 0.0
    %208 = vmatprep.subr.mxu0 0.0
    %209 = vmatpush2.msra.mxu0 0.0
    %210 = vmatprep.subr.mxu0 0.0
    %211 = vmatpush2.msra.mxu0 0.0
    %212 = vmatprep.subr.mxu0 0.0
    %213 = vmatpush2.msra.mxu0 0.0
    %214 = vmatprep.subr.mxu0 0.0
    %215 = vmatpush2.msra.mxu0 0.0
    %216 = vmatprep.subr.mxu0 0.0
    %217 = vmatpush2.msra.mxu0 0.0
    %218 = vmatprep.subr.mxu0 0.0
    %219 = vmatpush2.msra.mxu0 0.0
    %220 = vmatprep.subr.mxu0 0.0
    %221 = vmatpush2.msra.mxu0 0.0
    %222 = vmatprep.mubr.f32.mxu0 0.0
    %223 = vmatmul.mubr.f32.gmra.mxu0 %v134
    %v224 = vpop.f32.mrf.mxu0
    %v225 = vadd.f32 %v156, %v224
    %v226 = vpop.f32.mrf.mxu0
    %227 = vdwg.mxu0
    %v228 = vld [vmem:[#allocation6] sm:$0xff]
    %v229 = vld [vmem:[#allocation6 + $0x8] sm:$0xff]
    %v230 = vld [vmem:[#allocation12] sm:$0xff]
    %v231 = vld [vmem:[#allocation12 + $0x8] sm:$0xff]
    %v232 = vld [vmem:[#allocation12 + $0x10] sm:$0xff]
    %v233 = vld [vmem:[#allocation12 + $0x18] sm:$0xff]
    %v234 = vld [vmem:[#allocation12 + $0x20] sm:$0xff]
    %v235 = vld [vmem:[#allocation12 + $0x28] sm:$0xff]
    %v236 = vld [vmem:[#allocation12 + $0x30] sm:$0xff]
    %v237 = vld [vmem:[#allocation12 + $0x38] sm:$0xff]
    %v238 = vld [vmem:[#allocation12 + $0x40] sm:$0xff]
    %v239 = vld [vmem:[#allocation12 + $0x48] sm:$0xff]
    %v240 = vld [vmem:[#allocation12 + $0x50] sm:$0xff]
    %v241 = vld [vmem:[#allocation12 + $0x58] sm:$0xff]
    %v242 = vld [vmem:[#allocation12 + $0x60] sm:$0xff]
    %v243 = vld [vmem:[#allocation12 + $0x68] sm:$0xff]
    %v244 = vld [vmem:[#allocation12 + $0x70] sm:$0xff]
    %v245 = vld [vmem:[#allocation12 + $0x78] sm:$0xff]
    %v246 = vld [vmem:[%s7] sm:$0x1]
    %v248 = vlaneseq
    %v249 = vshrl.u32 %v248, 7
    %v250 = vsub.s32 0, %v249
    %v251 = vrot.slane %v246, %v250
    %253 = vmatprep.subr.mxu0 0.0
    %254 = vmatpush1.msra.mxu0 %v245
    %255 = vmatprep.subr.mxu0 0.0
    %256 = vmatpush1.msra.mxu0 %v244
    %257 = vmatprep.subr.mxu0 0.0
    %258 = vmatpush1.msra.mxu0 %v243
    %259 = vmatprep.subr.mxu0 0.0
    %260 = vmatpush1.msra.mxu0 %v242
    %261 = vmatprep.subr.mxu0 0.0
    %262 = vmatpush1.msra.mxu0 %v241
    %263 = vmatprep.subr.mxu0 0.0
    %264 = vmatpush1.msra.mxu0 %v240
    %265 = vmatprep.subr.mxu0 0.0
    %266 = vmatpush1.msra.mxu0 %v239
    %267 = vmatprep.subr.mxu0 0.0
    %268 = vmatpush1.msra.mxu0 %v238
    %269 = vmatprep.subr.mxu0 0.0
    %270 = vmatpush1.msra.mxu0 %v237
    %271 = vmatprep.subr.mxu0 0.0
    %272 = vmatpush1.msra.mxu0 %v236
    %273 = vmatprep.subr.mxu0 0.0
    %274 = vmatpush1.msra.mxu0 %v235
    %275 = vmatprep.subr.mxu0 0.0
    %276 = vmatpush1.msra.mxu0 %v234
    %277 = vmatprep.subr.mxu0 0.0
    %278 = vmatpush1.msra.mxu0 %v233
    %279 = vmatprep.subr.mxu0 0.0
    %280 = vmatpush1.msra.mxu0 %v232
    %281 = vmatprep.subr.mxu0 0.0
    %282 = vmatpush1.msra.mxu0 %v231
    %283 = vmatprep.subr.mxu0 0.0
    %284 = vmatpush1.msra.mxu0 %v230
    %285 = vmatprep.subr.mxu0 0.0
    %286 = vmatpush2.msra.mxu0 0.0
    %287 = vmatprep.subr.mxu0 0.0
    %288 = vmatpush2.msra.mxu0 0.0
    %289 = vmatprep.subr.mxu0 0.0
    %290 = vmatpush2.msra.mxu0 0.0
    %291 = vmatprep.subr.mxu0 0.0
    %292 = vmatpush2.msra.mxu0 0.0
    %293 = vmatprep.subr.mxu0 0.0
    %294 = vmatpush2.msra.mxu0 0.0
    %295 = vmatprep.subr.mxu0 0.0
    %296 = vmatpush2.msra.mxu0 0.0
    %297 = vmatprep.subr.mxu0 0.0
    %298 = vmatpush2.msra.mxu0 0.0
    %299 = vmatprep.subr.mxu0 0.0
    %300 = vmatpush2.msra.mxu0 0.0
    %301 = vmatprep.subr.mxu0 0.0
    %302 = vmatpush2.msra.mxu0 0.0
    %303 = vmatprep.subr.mxu0 0.0
    %304 = vmatpush2.msra.mxu0 0.0
    %305 = vmatprep.subr.mxu0 0.0
    %306 = vmatpush2.msra.mxu0 0.0
    %307 = vmatprep.subr.mxu0 0.0
    %308 = vmatpush2.msra.mxu0 0.0
    %309 = vmatprep.subr.mxu0 0.0
    %310 = vmatpush2.msra.mxu0 0.0
    %311 = vmatprep.subr.mxu0 0.0
    %312 = vmatpush2.msra.mxu0 0.0
    %313 = vmatprep.subr.mxu0 0.0
    %314 = vmatpush2.msra.mxu0 0.0
    %315 = vmatprep.subr.mxu0 0.0
    %316 = vmatpush2.msra.mxu0 0.0
    %317 = vmatprep.mubr.f32.mxu0 0.0
    %318 = vmatmul.mubr.f32.gmra.mxu0 %v228
    %v319 = vpop.f32.mrf.mxu0
    %v320 = vadd.f32 %v251, %v319
    %v321 = vpop.f32.mrf.mxu0
    %322 = vmatprep.mubr.f32.mxu0 0.0
    %323 = vmatmul.mubr.f32.gmra.mxu0 %v229
    %v324 = vpop.f32.mrf.mxu0
    %v325 = vadd.f32 %v251, %v324
    %v326 = vpop.f32.mrf.mxu0
    %327 = vdwg.mxu0
    %v328 = vld [vmem:[#allocation8] sm:$0xff]
    %v329 = vld [vmem:[#allocation8 + $0x8] sm:$0xff]
    %v330 = vld [vmem:[#allocation14] sm:$0xff]
    %v331 = vld [vmem:[#allocation14 + $0x8] sm:$0xff]
    %v332 = vld [vmem:[#allocation14 + $0x10] sm:$0xff]
    %v333 = vld [vmem:[#allocation14 + $0x18] sm:$0xff]
    %v334 = vld [vmem:[#allocation14 + $0x20] sm:$0xff]
    %v335 = vld [vmem:[#allocation14 + $0x28] sm:$0xff]
    %v336 = vld [vmem:[#allocation14 + $0x30] sm:$0xff]
    %v337 = vld [vmem:[#allocation14 + $0x38] sm:$0xff]
    %v338 = vld [vmem:[#allocation14 + $0x40] sm:$0xff]
    %v339 = vld [vmem:[#allocation14 + $0x48] sm:$0xff]
    %v340 = vld [vmem:[#allocation14 + $0x50] sm:$0xff]
    %v341 = vld [vmem:[#allocation14 + $0x58] sm:$0xff]
    %v342 = vld [vmem:[#allocation14 + $0x60] sm:$0xff]
    %v343 = vld [vmem:[#allocation14 + $0x68] sm:$0xff]
    %v344 = vld [vmem:[#allocation14 + $0x70] sm:$0xff]
    %v345 = vld [vmem:[#allocation14 + $0x78] sm:$0xff]
    %v346 = vld [vmem:[%s9] sm:$0x1]
    %v348 = vlaneseq
    %v349 = vshrl.u32 %v348, 7
    %v350 = vsub.s32 0, %v349
    %v351 = vrot.slane %v346, %v350
    %353 = vmatprep.subr.mxu0 0.0
    %354 = vmatpush1.msra.mxu0 %v345
    %355 = vmatprep.subr.mxu0 0.0
    %356 = vmatpush1.msra.mxu0 %v344
    %357 = vmatprep.subr.mxu0 0.0
    %358 = vmatpush1.msra.mxu0 %v343
    %359 = vmatprep.subr.mxu0 0.0
    %360 = vmatpush1.msra.mxu0 %v342
    %361 = vmatprep.subr.mxu0 0.0
    %362 = vmatpush1.msra.mxu0 %v341
    %363 = vmatprep.subr.mxu0 0.0
    %364 = vmatpush1.msra.mxu0 %v340
    %365 = vmatprep.subr.mxu0 0.0
    %366 = vmatpush1.msra.mxu0 %v339
    %367 = vmatprep.subr.mxu0 0.0
    %368 = vmatpush1.msra.mxu0 %v338
    %369 = vmatprep.subr.mxu0 0.0
    %370 = vmatpush1.msra.mxu0 %v337
    %371 = vmatprep.subr.mxu0 0.0
    %372 = vmatpush1.msra.mxu0 %v336
    %373 = vmatprep.subr.mxu0 0.0
    %374 = vmatpush1.msra.mxu0 %v335
    %375 = vmatprep.subr.mxu0 0.0
    %376 = vmatpush1.msra.mxu0 %v334
    %377 = vmatprep.subr.mxu0 0.0
    %378 = vmatpush1.msra.mxu0 %v333
    %379 = vmatprep.subr.mxu0 0.0
    %380 = vmatpush1.msra.mxu0 %v332
    %381 = vmatprep.subr.mxu0 0.0
    %382 = vmatpush1.msra.mxu0 %v331
    %383 = vmatprep.subr.mxu0 0.0
    %384 = vmatpush1.msra.mxu0 %v330
    %385 = vmatprep.subr.mxu0 0.0
    %386 = vmatpush2.msra.mxu0 0.0
    %387 = vmatprep.subr.mxu0 0.0
    %388 = vmatpush2.msra.mxu0 0.0
    %389 = vmatprep.subr.mxu0 0.0
    %390 = vmatpush2.msra.mxu0 0.0
    %391 = vmatprep.subr.mxu0 0.0
    %392 = vmatpush2.msra.mxu0 0.0
    %393 = vmatprep.subr.mxu0 0.0
    %394 = vmatpush2.msra.mxu0 0.0
    %395 = vmatprep.subr.mxu0 0.0
    %396 = vmatpush2.msra.mxu0 0.0
    %397 = vmatprep.subr.mxu0 0.0
    %398 = vmatpush2.msra.mxu0 0.0
    %399 = vmatprep.subr.mxu0 0.0
    %400 = vmatpush2.msra.mxu0 0.0
    %401 = vmatprep.subr.mxu0 0.0
    %402 = vmatpush2.msra.mxu0 0.0
    %403 = vmatprep.subr.mxu0 0.0
    %404 = vmatpush2.msra.mxu0 0.0
    %405 = vmatprep.subr.mxu0 0.0
    %406 = vmatpush2.msra.mxu0 0.0
    %407 = vmatprep.subr.mxu0 0.0
    %408 = vmatpush2.msra.mxu0 0.0
    %409 = vmatprep.subr.mxu0 0.0
    %410 = vmatpush2.msra.mxu0 0.0
    %411 = vmatprep.subr.mxu0 0.0
    %412 = vmatpush2.msra.mxu0 0.0
    %413 = vmatprep.subr.mxu0 0.0
    %414 = vmatpush2.msra.mxu0 0.0
    %415 = vmatprep.subr.mxu0 0.0
    %416 = vmatpush2.msra.mxu0 0.0
    %417 = vmatprep.mubr.f32.mxu0 0.0
    %418 = vmatmul.mubr.f32.gmra.mxu0 %v328
    %v419 = vpop.f32.mrf.mxu0
    %v420 = vadd.f32 %v351, %v419
    %v421 = vpop.f32.mrf.mxu0
    %422 = vmatprep.mubr.f32.mxu0 0.0
    %423 = vmatmul.mubr.f32.gmra.mxu0 %v329
    %v424 = vpop.f32.mrf.mxu0
    %v425 = vadd.f32 %v351, %v424
    %v426 = vpop.f32.mrf.mxu0
    %427 = vdwg.mxu0
    %v429 = vcombine.high %v225, %v225
    %v431 = vunpack.c.l.s4 1966171168
    %v432 = vunpack.c.0.s8 %v431
    %v433 = vlaneseq
    %v434 = vshrl.u32 %v433, 7
    %v435 = vsub.s32 %v432, %v434
    %v436 = vrot.slane %v225, %v435
    %v438 = vunpack.c.l.s4 1966171168
    %v439 = vunpack.c.0.s8 %v438
    %v440 = vlaneseq
    %v441 = vshrl.u32 %v440, 7
    %v442 = vsub.s32 %v439, %v441
    %v443 = vrot.slane %v429, %v442
    %v444 = vcombine.high %v436, %v436
    %v445 = vcombine.high %v443, %v443
    %v447 = vunpack.c.l.s4 1966171168
    %v448 = vunpack.c.0.s8 %v447
    %v449 = vlaneseq
    %v450 = vshrl.u32 %v449, 7
    %v451 = vsub.s32 %v448, %v450
    %v452 = vrot.slane %v436, %v451
    %v454 = vunpack.c.l.s4 1966171168
    %v455 = vunpack.c.0.s8 %v454
    %v456 = vlaneseq
    %v457 = vshrl.u32 %v456, 7
    %v458 = vsub.s32 %v455, %v457
    %v459 = vrot.slane %v443, %v458
    %v461 = vunpack.c.l.s4 1966171168
    %v462 = vunpack.c.0.s8 %v461
    %v463 = vlaneseq
    %v464 = vshrl.u32 %v463, 7
    %v465 = vsub.s32 %v462, %v464
    %v466 = vrot.slane %v444, %v465
    %v468 = vunpack.c.l.s4 1966171168
    %v469 = vunpack.c.0.s8 %v468
    %v470 = vlaneseq
    %v471 = vshrl.u32 %v470, 7
    %v472 = vsub.s32 %v469, %v471
    %v473 = vrot.slane %v445, %v472
    %v474 = vcombine.high %v452, %v452
    %v475 = vcombine.high %v459, %v459
    %v476 = vcombine.high %v466, %v466
    %v477 = vcombine.high %v473, %v473
    %v478 = vlaneseq
    %v479 = vshrl.u32 %v478, 7
    %v480 = vsub.s32 0, %v479
    %v481 = vrot.slane %v452, %v480
    %v482 = vlaneseq
    %v483 = vshrl.u32 %v482, 7
    %v484 = vsub.s32 0, %v483
    %v485 = vrot.slane %v466, %v484
    %v486 = vlaneseq
    %v487 = vshrl.u32 %v486, 7
    %v488 = vsub.s32 0, %v487
    %v489 = vrot.slane %v474, %v488
    %v490 = vlaneseq
    %v491 = vshrl.u32 %v490, 7
    %v492 = vsub.s32 0, %v491
    %v493 = vrot.slane %v476, %v492
    %v494 = vlaneseq
    %v495 = vshrl.u32 %v494, 7
    %v496 = vsub.s32 0, %v495
    %v497 = vrot.slane %v459, %v496
    %v498 = vlaneseq
    %v499 = vshrl.u32 %v498, 7
    %v500 = vsub.s32 0, %v499
    %v501 = vrot.slane %v473, %v500
    %v502 = vlaneseq
    %v503 = vshrl.u32 %v502, 7
    %v504 = vsub.s32 0, %v503
    %v505 = vrot.slane %v475, %v504
    %v506 = vlaneseq
    %v507 = vshrl.u32 %v506, 7
    %v508 = vsub.s32 0, %v507
    %v509 = vrot.slane %v477, %v508
    %v518 = vadd.f32 %v481, %v320
    %v519 = vadd.f32 %v481, %v325
    %v520 = vadd.f32 %v485, %v320
    %v521 = vadd.f32 %v485, %v325
    %v522 = vadd.f32 %v489, %v320
    %v523 = vadd.f32 %v489, %v325
    %v524 = vadd.f32 %v493, %v320
    %v525 = vadd.f32 %v493, %v325
    %v526 = vadd.f32 %v497, %v320
    %v527 = vadd.f32 %v497, %v325
    %v528 = vadd.f32 %v501, %v320
    %v529 = vadd.f32 %v501, %v325
    %v530 = vadd.f32 %v505, %v320
    %v531 = vadd.f32 %v505, %v325
    %v532 = vadd.f32 %v509, %v320
    %v533 = vadd.f32 %v509, %v325
    %v534 = vtanh.pop %v518
    %v535 = vtanh.pop %v519
    %v536 = vtanh.pop %v520
    %v537 = vtanh.pop %v521
    %v538 = vtanh.pop %v522
    %v539 = vtanh.pop %v523
    %v540 = vtanh.pop %v524
    %v541 = vtanh.pop %v525
    %v542 = vtanh.pop %v526
    %v543 = vtanh.pop %v527
    %v544 = vtanh.pop %v528
    %v545 = vtanh.pop %v529
    %v546 = vtanh.pop %v530
    %v547 = vtanh.pop %v531
    %v548 = vtanh.pop %v532
    %v549 = vtanh.pop %v533
    %v550 = vld [vmem:[%s10] sm:$0x1]
    %v552 = vlaneseq
    %v553 = vshrl.u32 %v552, 7
    %v554 = vsub.s32 0, %v553
    %v555 = vrot.slane %v550, %v554
    %v557 = vmul.f32 %v534, %v555
    %v558 = vmul.f32 %v535, %v555
    %v559 = vmul.f32 %v536, %v555
    %v560 = vmul.f32 %v537, %v555
    %v561 = vmul.f32 %v538, %v555
    %v562 = vmul.f32 %v539, %v555
    %v563 = vmul.f32 %v540, %v555
    %v564 = vmul.f32 %v541, %v555
    %v565 = vmul.f32 %v542, %v555
    %v566 = vmul.f32 %v543, %v555
    %v567 = vmul.f32 %v544, %v555
    %v568 = vmul.f32 %v545, %v555
    %v569 = vmul.f32 %v546, %v555
    %v570 = vmul.f32 %v547, %v555
    %v571 = vmul.f32 %v548, %v555
    %v572 = vmul.f32 %v549, %v555
    %573 = vadd.xlane.f32.xlu0 %v557
    %v574 = vpop.xlane.xlu0 %573
    %575 = vadd.xlane.f32.xlu0 %v558
    %v576 = vpop.xlane.xlu0 %575
    %577 = vadd.xlane.f32.xlu0 %v559
    %v578 = vpop.xlane.xlu0 %577
    %579 = vadd.xlane.f32.xlu0 %v560
    %v580 = vpop.xlane.xlu0 %579
    %581 = vadd.xlane.f32.xlu0 %v561
    %v582 = vpop.xlane.xlu0 %581
    %583 = vadd.xlane.f32.xlu0 %v562
    %v584 = vpop.xlane.xlu0 %583
    %585 = vadd.xlane.f32.xlu0 %v563
    %v586 = vpop.xlane.xlu0 %585
    %587 = vadd.xlane.f32.xlu0 %v564
    %v588 = vpop.xlane.xlu0 %587
    %589 = vadd.xlane.f32.xlu0 %v565
    %v590 = vpop.xlane.xlu0 %589
    %591 = vadd.xlane.f32.xlu0 %v566
    %v592 = vpop.xlane.xlu0 %591
    %593 = vadd.xlane.f32.xlu0 %v567
    %v594 = vpop.xlane.xlu0 %593
    %595 = vadd.xlane.f32.xlu0 %v568
    %v596 = vpop.xlane.xlu0 %595
    %597 = vadd.xlane.f32.xlu0 %v569
    %v598 = vpop.xlane.xlu0 %597
    %599 = vadd.xlane.f32.xlu0 %v570
    %v600 = vpop.xlane.xlu0 %599
    %601 = vadd.xlane.f32.xlu0 %v571
    %v602 = vpop.xlane.xlu0 %601
    %603 = vadd.xlane.f32.xlu0 %v572
    %v604 = vpop.xlane.xlu0 %603
    %s605 = sld [smem:[#allocation2]]
    %v606 = vstv %s605
    %v607 = vadd.f32 %v574, %v606
    %v608 = vadd.f32 %v576, %v606
    %v609 = vadd.f32 %v578, %v606
    %v610 = vadd.f32 %v580, %v606
    %v611 = vadd.f32 %v582, %v606
    %v612 = vadd.f32 %v584, %v606
    %v613 = vadd.f32 %v586, %v606
    %v614 = vadd.f32 %v588, %v606
    %v615 = vadd.f32 %v590, %v606
    %v616 = vadd.f32 %v592, %v606
    %v617 = vadd.f32 %v594, %v606
    %v618 = vadd.f32 %v596, %v606
    %v619 = vadd.f32 %v598, %v606
    %v620 = vadd.f32 %v600, %v606
    %v621 = vadd.f32 %v602, %v606
    %v622 = vadd.f32 %v604, %v606
    %v623 = vld [vmem:[#allocation9] sm:$0xff]
    %vm624 = vcmp.ne.s32.totalorder %v623, 0
    %v641 = vlaneseq
    %v642 = vand.u32 %v641, 127
    %v643 = vlaneseq
    %v644 = vshrl.u32 %v643, 7
    %v645 = vsub.s32 %v642, %v644
    %v646 = vrot.slane %v607, %v645
    %v647 = vadd.s32 %v642, 4294967288
    %v648 = vlaneseq
    %v649 = vshrl.u32 %v648, 7
    %v650 = vsub.s32 %v647, %v649
    %v651 = vrot.slane %v608, %v650
    %vm652 = vcmask 130112
    %v653 = vsel %vm652, %v651, %v646
    %v654 = vlaneseq
    %v655 = vshrl.u32 %v654, 7
    %v656 = vsub.s32 %v642, %v655
    %v657 = vrot.slane %v609, %v656
    %v658 = vlaneseq
    %v659 = vshrl.u32 %v658, 7
    %v660 = vsub.s32 %v647, %v659
    %v661 = vrot.slane %v610, %v660
    %v662 = vsel %vm652, %v661, %v657
    %v663 = vlaneseq
    %v664 = vshrl.u32 %v663, 7
    %v665 = vsub.s32 %v642, %v664
    %v666 = vrot.slane %v611, %v665
    %v667 = vlaneseq
    %v668 = vshrl.u32 %v667, 7
    %v669 = vsub.s32 %v647, %v668
    %v670 = vrot.slane %v612, %v669
    %v671 = vsel %vm652, %v670, %v666
    %v672 = vlaneseq
    %v673 = vshrl.u32 %v672, 7
    %v674 = vsub.s32 %v642, %v673
    %v675 = vrot.slane %v613, %v674
    %v676 = vlaneseq
    %v677 = vshrl.u32 %v676, 7
    %v678 = vsub.s32 %v647, %v677
    %v679 = vrot.slane %v614, %v678
    %v680 = vsel %vm652, %v679, %v675
    %v681 = vlaneseq
    %v682 = vshrl.u32 %v681, 7
    %v683 = vsub.s32 %v642, %v682
    %v684 = vrot.slane %v615, %v683
    %v685 = vlaneseq
    %v686 = vshrl.u32 %v685, 7
    %v687 = vsub.s32 %v647, %v686
    %v688 = vrot.slane %v616, %v687
    %v689 = vsel %vm652, %v688, %v684
    %v690 = vlaneseq
    %v691 = vshrl.u32 %v690, 7
    %v692 = vsub.s32 %v642, %v691
    %v693 = vrot.slane %v617, %v692
    %v694 = vlaneseq
    %v695 = vshrl.u32 %v694, 7
    %v696 = vsub.s32 %v647, %v695
    %v697 = vrot.slane %v618, %v696
    %v698 = vsel %vm652, %v697, %v693
    %v699 = vlaneseq
    %v700 = vshrl.u32 %v699, 7
    %v701 = vsub.s32 %v642, %v700
    %v702 = vrot.slane %v619, %v701
    %v703 = vlaneseq
    %v704 = vshrl.u32 %v703, 7
    %v705 = vsub.s32 %v647, %v704
    %v706 = vrot.slane %v620, %v705
    %v707 = vsel %vm652, %v706, %v702
    %v708 = vlaneseq
    %v709 = vshrl.u32 %v708, 7
    %v710 = vsub.s32 %v642, %v709
    %v711 = vrot.slane %v621, %v710
    %v712 = vlaneseq
    %v713 = vshrl.u32 %v712, 7
    %v714 = vsub.s32 %v647, %v713
    %v715 = vrot.slane %v622, %v714
    %v716 = vsel %vm652, %v715, %v711
    %vm717 = vcmask 1041409
    %v718 = vsel %vm717, %v662, %v653
    %vm719 = vcmask 1042434
    %v720 = vsel %vm719, %v671, %v718
    %vm721 = vcmask 1043459
    %v722 = vsel %vm721, %v680, %v720
    %vm723 = vcmask 1044484
    %v724 = vsel %vm723, %v689, %v722
    %vm725 = vcmask 1045509
    %v726 = vsel %vm725, %v698, %v724
    %vm727 = vcmask 1046534
    %v728 = vsel %vm727, %v707, %v726
    %vm729 = vcmask 1047559
    %v730 = vsel %vm729, %v716, %v728
    %v732 = vsel %vm624, %v730, -1000000.0
    %vm733 = vcmask 130048
    %v734 = vsel %vm733, %v732, -inf
    %735 = vmax.xlane.f32.xlu0 %v734
    %v736 = vpop.xlane.xlu0 %735
    %v737 = vsub.f32 %v732, %v736
    %v738 = vmul.f32 %v737, 1.442695
    %v739 = vpow.pop %v738
    %v740 = vsel %vm733, %v739, 0.0
    %741 = vadd.xlane.f32.xlu0 %v740
    %v742 = vpop.xlane.xlu0 %741
    %v743 = vrcp.pop %v742
    %v744 = vmul.f32 %v739, %v743
    %v746 = vsel %vm733, %v744, 0
    %748 = vmatprep.subr.mxu0 0.0
    %749 = vmatpush1.msra.mxu0 0.0
    %750 = vmatprep.subr.mxu0 0.0
    %751 = vmatpush1.msra.mxu0 0.0
    %752 = vmatprep.subr.mxu0 0.0
    %753 = vmatpush1.msra.mxu0 0.0
    %754 = vmatprep.subr.mxu0 0.0
    %755 = vmatpush1.msra.mxu0 0.0
    %756 = vmatprep.subr.mxu0 0.0
    %757 = vmatpush1.msra.mxu0 0.0
    %758 = vmatprep.subr.mxu0 0.0
    %759 = vmatpush1.msra.mxu0 0.0
    %760 = vmatprep.subr.mxu0 0.0
    %761 = vmatpush1.msra.mxu0 0.0
    %762 = vmatprep.subr.mxu0 0.0
    %763 = vmatpush1.msra.mxu0 0.0
    %764 = vmatprep.subr.mxu0 0.0
    %765 = vmatpush1.msra.mxu0 0.0
    %766 = vmatprep.subr.mxu0 0.0
    %767 = vmatpush1.msra.mxu0 0.0
    %768 = vmatprep.subr.mxu0 0.0
    %769 = vmatpush1.msra.mxu0 0.0
    %770 = vmatprep.subr.mxu0 0.0
    %771 = vmatpush1.msra.mxu0 0.0
    %772 = vmatprep.subr.mxu0 0.0
    %773 = vmatpush1.msra.mxu0 0.0
    %774 = vmatprep.subr.mxu0 0.0
    %775 = vmatpush1.msra.mxu0 0.0
    %776 = vmatprep.subr.mxu0 0.0
    %777 = vmatpush1.msra.mxu0 %v425
    %778 = vmatprep.subr.mxu0 0.0
    %779 = vmatpush1.msra.mxu0 %v420
    %780 = vmatprep.subr.mxu0 0.0
    %781 = vmatpush2.msra.mxu0 0.0
    %782 = vmatprep.subr.mxu0 0.0
    %783 = vmatpush2.msra.mxu0 0.0
    %784 = vmatprep.subr.mxu0 0.0
    %785 = vmatpush2.msra.mxu0 0.0
    %786 = vmatprep.subr.mxu0 0.0
    %787 = vmatpush2.msra.mxu0 0.0
    %788 = vmatprep.subr.mxu0 0.0
    %789 = vmatpush2.msra.mxu0 0.0
    %790 = vmatprep.subr.mxu0 0.0
    %791 = vmatpush2.msra.mxu0 0.0
    %792 = vmatprep.subr.mxu0 0.0
    %793 = vmatpush2.msra.mxu0 0.0
    %794 = vmatprep.subr.mxu0 0.0
    %795 = vmatpush2.msra.mxu0 0.0
    %796 = vmatprep.subr.mxu0 0.0
    %797 = vmatpush2.msra.mxu0 0.0
    %798 = vmatprep.subr.mxu0 0.0
    %799 = vmatpush2.msra.mxu0 0.0
    %800 = vmatprep.subr.mxu0 0.0
    %801 = vmatpush2.msra.mxu0 0.0
    %802 = vmatprep.subr.mxu0 0.0
    %803 = vmatpush2.msra.mxu0 0.0
    %804 = vmatprep.subr.mxu0 0.0
    %805 = vmatpush2.msra.mxu0 0.0
    %806 = vmatprep.subr.mxu0 0.0
    %807 = vmatpush2.msra.mxu0 0.0
    %808 = vmatprep.subr.mxu0 0.0
    %809 = vmatpush2.msra.mxu0 0.0
    %810 = vmatprep.subr.mxu0 0.0
    %811 = vmatpush2.msra.mxu0 0.0
    %812 = vmatprep.mubr.f32.mxu0 0.0
    %813 = vmatmul.mubr.f32.gmra.mxu0 %v746
    %v814 = vpop.f32.mrf.mxu0
    %v815 = vadd.f32 0.0, %v814
    %v816 = vpop.f32.mrf.mxu0
    %817 = vdwg.mxu0
    %818 = vst [vmem:[#allocation15] sm:$0xff] %v815
    // Predicated region
    $region78: #{tpu_custom_call.1} parent=1 // pred_check
      _
    $region79: #{tpu_custom_call.1} parent=1 // pred_check_branch
      %820 = sbr.rel (0) target = $region81
    $region80: #{tpu_custom_call.1} parent=1 // pred_region
      %s822 = ssub.s32 128, 128
      %823 = vsyncadd [#allocation5], %s822
      %s825 = sshll.u32 [#allocation15], 4
      %s826 = int_to_ptr.vmem [resolvable:$true] %s825
      %828 = dma.vmem_to_hbm [thread:$0]  %s826, 128, %s12, [#allocation5]
    $region81: #{tpu_custom_call.1} parent=1 // pred_fallthru
      _
    // Predicated region
    $region82: #{tpu_custom_call.1} parent=1 // pred_check
      _
    $region83: #{tpu_custom_call.1} parent=1 // pred_check_branch
      %830 = sbr.rel (0) target = $region85
    $region84: #{tpu_custom_call.1} parent=1 // pred_region
      %831 = dma.done [#allocation5], 128
    $region85: #{tpu_custom_call.1} parent=1 // pred_fallthru
      _
    %832 = vsyncpa [#allocation4], 1
    %833 = vsyncpa [#allocation7], 1
    %834 = vsyncpa [#allocation10], 1
    %835 = vsyncpa [#allocation13], 1
    %836 = vsyncpa [#allocation5], 1

</llo_original>
